<compile_context>
chip_gen: v7x
topology: tpu7x:2x2x1
jax: 0.10.0
libtpu: 0.0.40
codegen_flags: <defaults>
</compile_context>

<pallas_src>
import functools

import jax
import jax.numpy as jnp
from jax.experimental import pallas as pl
from jax.experimental.pallas import tpu as pltpu


# ---------------------------------------------------------------------------
# small helpers
# ---------------------------------------------------------------------------

def _round_up(x, m):
    return ((x + m - 1) // m) * m


def _round_down(x, m):
    return (x // m) * m


def _vmem_capacity_bytes():
    """Physical VMEM per TensorCore (64 MiB v7x, 128 MiB v5e/v6e)."""
    try:
        return int(pltpu.get_tpu_info().vmem_capacity_bytes)
    except Exception:
        return 64 * 1024 * 1024          # safe lower bound on every generation


def _flatten_pad(x, n, n_pad):
    """(B, C, H, W) -> (B, C, n_pad): pure reshape + zero pad of the lane axis."""
    b, c = x.shape[0], x.shape[1]
    xr = x.reshape(b, c, n)
    if n_pad != n:
        xr = jnp.pad(xr, ((0, 0), (0, 0), (0, n_pad - n)))
    return xr


def _const_spec(shape, index_map):
    """Grid-invariant operand (MLP weights): single-buffered, fetched once."""
    return pl.BlockSpec(shape, index_map, pipeline_mode=pl.Buffered(1))


def _mlp_gains(y, w1t_ref, b1_ref, w2t_ref, b2_ref):
    """Lane-major MLP: (1,4C)@(4C,H) -> ReLU -> (1,H)@(H,2C) -> sigmoid, +1."""
    h = jnp.dot(y, w1t_ref[...], preferred_element_type=jnp.float32) + b1_ref[...]
    h = jnp.maximum(h, 0.0)
    z = jnp.dot(h, w2t_ref[...], preferred_element_type=jnp.float32) + b2_ref[...]
    return jax.nn.sigmoid(z) + 1.0       # residual folded: out = (1 + w) * x


# ---------------------------------------------------------------------------
# kernels
# ---------------------------------------------------------------------------

def _cw_fused_kernel(x1_ref, x2_ref, w1t_ref, b1_ref, w2t_ref, b2_ref,
                     out1_ref, out2_ref, *, n_valid):
    """Single pass per batch: pooling + MLP + gated residual on one (C,N) block."""
    c, n_pad = x1_ref.shape
    x1 = x1_ref[...].astype(jnp.float32)
    x2 = x2_ref[...].astype(jnp.float32)

    if n_pad != n_valid:                  # static: keep zero-padded lanes out of max
        valid = jax.lax.broadcasted_iota(jnp.int32, (c, n_pad), 1) < n_valid
        x1m = jnp.where(valid, x1, -jnp.inf)
        x2m = jnp.where(valid, x2, -jnp.inf)
    else:
        x1m, x2m = x1, x2

    inv_n = jnp.float32(1.0 / n_valid)
    avg1 = jnp.sum(x1, axis=-1, keepdims=True) * inv_n   # zero pads don't bias sums
    avg2 = jnp.sum(x2, axis=-1, keepdims=True) * inv_n
    mx1 = jnp.max(x1m, axis=-1, keepdims=True)
    mx2 = jnp.max(x2m, axis=-1, keepdims=True)

    # torch.cat((avg1, avg2, max1, max2), dim=1), as one lane-major row vector.
    y = jnp.transpose(jnp.concatenate([avg1, avg2, mx1, mx2], axis=0))   # (1, 4C)
    gains = _mlp_gains(y, w1t_ref, b1_ref, w2t_ref, b2_ref)              # (1, 2C)

    g1 = jnp.transpose(gains[:, :c])      # (C, 1) per-channel sublane broadcast
    g2 = jnp.transpose(gains[:, c:])
    out1_ref[...] = (x1 * g1).astype(out1_ref.dtype)
    out2_ref[...] = (x2 * g2).astype(out2_ref.dtype)


def _pool_mlp_kernel(x1_ref, x2_ref, w1t_ref, b1_ref, w2t_ref, b2_ref,
                     gains_ref, sum1_sc, sum2_sc, max1_sc, max2_sc,
                     *, n_valid, tile_n, needs_mask):
    """Two-pass fallback, pass 1: tiled pooling + MLP -> per-batch gains (1, 2C)."""
    t = pl.program_id(1)
    c = x1_ref.shape[0]

    @pl.when(t == 0)
    def _init():
        sum1_sc[...] = jnp.zeros_like(sum1_sc)
        sum2_sc[...] = jnp.zeros_like(sum2_sc)
        max1_sc[...] = jnp.full_like(max1_sc, -jnp.inf)
        max2_sc[...] = jnp.full_like(max2_sc, -jnp.inf)

    x1 = x1_ref[...].astype(jnp.float32)
    x2 = x2_ref[...].astype(jnp.float32)
    if needs_mask:                        # static: only the last tile is zero-padded
        lane = jax.lax.broadcasted_iota(jnp.int32, (c, tile_n), 1) + t * tile_n
        valid = lane < n_valid
        x1m = jnp.where(valid, x1, -jnp.inf)
        x2m = jnp.where(valid, x2, -jnp.inf)
    else:
        x1m, x2m = x1, x2

    sum1_sc[...] += jnp.sum(x1, axis=-1, keepdims=True)
    sum2_sc[...] += jnp.sum(x2, axis=-1, keepdims=True)
    max1_sc[...] = jnp.maximum(max1_sc[...], jnp.max(x1m, axis=-1, keepdims=True))
    max2_sc[...] = jnp.maximum(max2_sc[...], jnp.max(x2m, axis=-1, keepdims=True))

    @pl.when(t == pl.num_programs(1) - 1)
    def _finalize():
        inv_n = jnp.float32(1.0 / n_valid)
        y = jnp.transpose(jnp.concatenate(
            [sum1_sc[...] * inv_n, sum2_sc[...] * inv_n,
             max1_sc[...], max2_sc[...]], axis=0))                      # (1, 4C)
        gains_ref[...] = _mlp_gains(y, w1t_ref, b1_ref, w2t_ref, b2_ref)


def _gate_kernel(gains_ref, x1_ref, x2_ref, out1_ref, out2_ref):
    """Two-pass fallback, pass 2: lane-dense tiled gated residual."""
    c = x1_ref.shape[0]
    gains = gains_ref[...]                # (1, 2C) == 1 + sigmoid(mlp)
    g1 = jnp.transpose(gains[:, :c])      # (C, 1)
    g2 = jnp.transpose(gains[:, c:])
    out1_ref[...] = (x1_ref[...].astype(jnp.float32) * g1).astype(out1_ref.dtype)
    out2_ref[...] = (x2_ref[...].astype(jnp.float32) * g2).astype(out2_ref.dtype)


# ---------------------------------------------------------------------------
# wrapper
# ---------------------------------------------------------------------------

def channel_weights_forward(x1, x2, params, *, force_two_pass=False,
                            tile_n=2048, donate_inputs=False):
    """ChannelWeights.forward. Returns (out1, out2) with x1/x2's shape & dtype."""
    w1, b1, w2, b2 = params               # PyTorch layout: (out, in), (out,)
    B, C, H, W = x1.shape
    assert x2.shape == x1.shape and x2.dtype == x1.dtype
    hid = w1.shape[0]
    assert w1.shape == (hid, 4 * C) and w2.shape == (2 * C, hid)
    assert b1.shape == (hid,) and b2.shape == (2 * C,)

    n = H * W
    itemsize = jnp.dtype(x1.dtype).itemsize

    # Lane-major weight layout so the in-kernel MLP is row-vector matmuls.
    w1t = jnp.asarray(w1, jnp.float32).T                 # (4C, hid)
    w2t = jnp.asarray(w2, jnp.float32).T                 # (hid, 2C)
    b1r = jnp.asarray(b1, jnp.float32).reshape(1, hid)
    b2r = jnp.asarray(b2, jnp.float32).reshape(1, 2 * C)
    weight_bytes = 4 * (w1t.size + w2t.size + b1r.size + b2r.size)

    cap = _vmem_capacity_bytes()
    budget = cap - (6 << 20)              # headroom for Mosaic internal scratch

    # Monolithic working set: (x1,x2,out1,out2) x 2 buffers + f32 body temps.
    n_pad_mono = _round_up(n, 128)        # lane-dense, unmasked stores
    mono_need = (8 * C * n_pad_mono * itemsize
                 + 2 * C * n_pad_mono * 4
                 + 2 * weight_bytes + (2 << 20))
    use_two_pass = force_two_pass or mono_need > budget

    if not use_two_pass:
        # -------- single fused pass: 1 HBM read + 1 write per element ----------
        n_pad = n_pad_mono
        x1r = _flatten_pad(x1, n, n_pad)
        x2r = _flatten_pad(x2, n, n_pad)
        xmap = lambda b: (b, 0, 0)
        wmap = lambda b: (0, 0)
        out1, out2 = pl.pallas_call(
            functools.partial(_cw_fused_kernel, n_valid=n),
            out_shape=(jax.ShapeDtypeStruct((B, C, n_pad), x1.dtype),
                       jax.ShapeDtypeStruct((B, C, n_pad), x1.dtype)),
            grid_spec=pltpu.PrefetchScalarGridSpec(
                num_scalar_prefetch=0,
                grid=(B,),
                in_specs=[
                    pl.BlockSpec((None, C, n_pad), xmap),
                    pl.BlockSpec((None, C, n_pad), xmap),
                    _const_spec((4 * C, hid), wmap),
                    _const_spec((1, hid), wmap),
                    _const_spec((hid, 2 * C), wmap),
                    _const_spec((1, 2 * C), wmap),
                ],
                out_specs=[
                    pl.BlockSpec((None, C, n_pad), xmap),
                    pl.BlockSpec((None, C, n_pad), xmap),
                ],
            ),
            compiler_params=pltpu.CompilerParams(
                dimension_semantics=("parallel",),        # batches -> both v7x TCs
                vmem_limit_bytes=int(min(cap, max(mono_need, 32 << 20)))),
            input_output_aliases={0: 0, 1: 1} if donate_inputs else {},
        )(x1r, x2r, w1t, b1r, w2t, b2r)
    else:
        # -------- two-pass fallback (v7x VMEM / very large H*W) ----------------
        per_lane_bytes = C * (8 * itemsize + 8)     # 4 tensors x 2 bufs + f32 temps
        tn_cap = _round_down(max(budget - weight_bytes - (4 << 20), 0)
                             // per_lane_bytes, 128)
        tn = max(128, min(_round_down(int(tile_n), 128), max(tn_cap, 128),
                          _round_up(n, 128)))
        n_pad = _round_up(n, tn)
        num_t = n_pad // tn
        needs_mask = n_pad != n

        x1r = _flatten_pad(x1, n, n_pad)
        x2r = _flatten_pad(x2, n, n_pad)

        xmap = lambda b, t: (b, 0, t)
        wmap = lambda b, t: (0, 0)
        gmap = lambda b, t: (b, 0, 0)

        # pass 1: pooling + MLP -> gains (B, 1, 2C)
        pool_need = (4 * C * tn * itemsize + 2 * C * tn * 4
                     + weight_bytes + (2 << 20))
        gains = pl.pallas_call(
            functools.partial(_pool_mlp_kernel, n_valid=n, tile_n=tn,
                              needs_mask=needs_mask),
            out_shape=jax.ShapeDtypeStruct((B, 1, 2 * C), jnp.float32),
            grid_spec=pltpu.PrefetchScalarGridSpec(
                num_scalar_prefetch=0,
                grid=(B, num_t),
                in_specs=[
                    pl.BlockSpec((None, C, tn), xmap),
                    pl.BlockSpec((None, C, tn), xmap),
                    _const_spec((4 * C, hid), wmap),
                    _const_spec((1, hid), wmap),
                    _const_spec((hid, 2 * C), wmap),
                    _const_spec((1, 2 * C), wmap),
                ],
                out_specs=pl.BlockSpec((None, 1, 2 * C), gmap),
                scratch_shapes=[pltpu.VMEM((C, 1), jnp.float32)
                                for _ in range(4)],
            ),
            compiler_params=pltpu.CompilerParams(
                dimension_semantics=("parallel", "arbitrary"),
                vmem_limit_bytes=int(min(cap, max(pool_need, 32 << 20)))),
        )(x1r, x2r, w1t, b1r, w2t, b2r)

        # pass 2: gating; both axes parallel so spatial tiles fill both v7x TCs
        # even at B == 1 (neutral on single-core v5e / v6e).
        gate_need = 8 * C * tn * itemsize + 2 * C * tn * 4 + (2 << 20)
        out1, out2 = pl.pallas_call(
            _gate_kernel,
            out_shape=(jax.ShapeDtypeStruct((B, C, n_pad), x1.dtype),
                       jax.ShapeDtypeStruct((B, C, n_pad), x1.dtype)),
            grid_spec=pltpu.PrefetchScalarGridSpec(
                num_scalar_prefetch=0,
                grid=(B, num_t),
                in_specs=[
                    pl.BlockSpec((None, 1, 2 * C), gmap),
                    pl.BlockSpec((None, C, tn), xmap),
                    pl.BlockSpec((None, C, tn), xmap),
                ],
                out_specs=[
                    pl.BlockSpec((None, C, tn), xmap),
                    pl.BlockSpec((None, C, tn), xmap),
                ],
            ),
            compiler_params=pltpu.CompilerParams(
                dimension_semantics=("parallel", "parallel"),
                vmem_limit_bytes=int(min(cap, max(gate_need, 32 << 20)))),
            input_output_aliases={1: 0, 2: 1} if donate_inputs else {},
        )(gains, x1r, x2r)

    if n_pad != n:
        out1 = out1[:, :, :n]
        out2 = out2[:, :, :n]
    return out1.reshape(B, C, H, W), out2.reshape(B, C, H, W)


# ---------------------------------------------------------------------------
# params / reference
# ---------------------------------------------------------------------------

def init_params(key, dim, reduction=1):
    """mlp = Linear(4C, 4C//r) -> ReLU -> Linear(4C//r, 2C) -> Sigmoid.
    trunc_normal_(std=0.02) approximated by normal(0, 0.02); init-only."""
    hid = 4 * dim // reduction
    k1, k2 = jax.random.split(key)
    w1 = 0.02 * jax.random.normal(k1, (hid, 4 * dim), jnp.float32)   # (out, in)
    b1 = jnp.zeros((hid,), jnp.float32)
    w2 = 0.02 * jax.random.normal(k2, (2 * dim, hid), jnp.float32)   # (out, in)
    b2 = jnp.zeros((2 * dim,), jnp.float32)
    return [w1, b1, w2, b2]


def reference_forward(x1, x2, params):
    """Pure-JAX mirror of ChannelWeights.forward."""
    w1, b1, w2, b2 = params
    B, C = x1.shape[0], x1.shape[1]
    x1f = x1.astype(jnp.float32)
    x2f = x2.astype(jnp.float32)
    avg1 = x1f.mean(axis=(2, 3));  mx1 = x1f.max(axis=(2, 3))
    avg2 = x2f.mean(axis=(2, 3));  mx2 = x2f.max(axis=(2, 3))
    y = jnp.concatenate([avg1, avg2, mx1, mx2], axis=1)              # (B, 4C)
    h = jnp.maximum(y @ w1.T + b1, 0.0)
    z = jax.nn.sigmoid(h @ w2.T + b2)                                # (B, 2C)
    cw1 = z[:, :C].reshape(B, C, 1, 1)
    cw2 = z[:, C:].reshape(B, C, 1, 1)
    out1 = cw1 * x1f + x1f
    out2 = cw2 * x2f + x2f
    return out1.astype(x1.dtype), out2.astype(x2.dtype)


# ---------------------------------------------------------------------------
# demo / self-test
# ---------------------------------------------------------------------------

if __name__ == "__main__":
    C, reduction = 64, 1
    key = jax.random.PRNGKey(0)
    kp, ka, kb, kc, kd = jax.random.split(key, 5)
    params = init_params(kp, C, reduction)

    def run_and_check(x1, x2, **kwargs):
        o1, o2 = channel_weights_forward(x1, x2, params, **kwargs)
        o1, o2 = jax.block_until_ready((o1, o2))
        r1, r2 = reference_forward(x1, x2, params)
        assert o1.shape == x1.shape and o2.shape == x2.shape
        assert o1.dtype == x1.dtype and o2.dtype == x2.dtype
        err = max(float(jnp.max(jnp.abs(o1 - r1))),
                  float(jnp.max(jnp.abs(o2 - r2))))
        assert err < 2e-4, f"max abs err {err} ({kwargs})"

    # (a) fused single-pass path, lane-aligned spatial size.
    x1 = jax.random.normal(ka, (2, C, 16, 16), jnp.float32)
    x2 = jax.random.normal(kb, (2, C, 16, 16), jnp.float32)
    run_and_check(x1, x2)

    # (b) tiled two-pass fallback (forced), batch=1, several spatial tiles.
    run_and_check(x1[:1], x2[:1], force_two_pass=True, tile_n=128)

    # (c) non-multiple-of-128 spatial: padded lanes + masked max (fused path).
    x1u = jax.random.normal(kc, (2, C, 10, 10), jnp.float32)
    x2u = jax.random.normal(kd, (2, C, 10, 10), jnp.float32)
    run_and_check(x1u, x2u)

    # (d) same ragged spatial size through the tiled fallback.
    run_and_check(x1u, x2u, force_two_pass=True, tile_n=128)

    print("KERNEL_OK")
</pallas_src>

<mosaic_0001>
module attributes {stable_mosaic.version = 11 : i64} {
  func.func @_cw_fused_kernel(%arg0: i32, %arg1: memref<1x64x256xf32, #tpu.memory_space<vmem>>, %arg2: memref<1x64x256xf32, #tpu.memory_space<vmem>>, %arg3: memref<256x256xf32, #tpu.memory_space<vmem>>, %arg4: memref<1x256xf32, #tpu.memory_space<vmem>>, %arg5: memref<256x128xf32, #tpu.memory_space<vmem>>, %arg6: memref<1x128xf32, #tpu.memory_space<vmem>>, %arg7: memref<1x64x256xf32, #tpu.memory_space<vmem>>, %arg8: memref<1x64x256xf32, #tpu.memory_space<vmem>>) attributes {dimension_semantics = [#tpu.dimension_semantics<parallel>], iteration_bounds = array<i64: 2>, scalar_prefetch = 0 : i64, scratch_operands = 0 : i64, tpu.core_type = #tpu.core_type<tc>, window_params = [{transform_indices = @transform_0, window_bounds = array<i64: 1, 64, 256>}, {transform_indices = @transform_1, window_bounds = array<i64: 1, 64, 256>}, {pipeline_mode = #tpu.pipeline_mode<synchronous>, transform_indices = @transform_2, window_bounds = array<i64: 256, 256>}, {pipeline_mode = #tpu.pipeline_mode<synchronous>, transform_indices = @transform_3, window_bounds = array<i64: 1, 256>}, {pipeline_mode = #tpu.pipeline_mode<synchronous>, transform_indices = @transform_4, window_bounds = array<i64: 256, 128>}, {pipeline_mode = #tpu.pipeline_mode<synchronous>, transform_indices = @transform_5, window_bounds = array<i64: 1, 128>}, {transform_indices = @transform_6, window_bounds = array<i64: 1, 64, 256>}, {transform_indices = @transform_7, window_bounds = array<i64: 1, 64, 256>}]} {
    %c0 = arith.constant 0 : index
    %c0_0 = arith.constant 0 : index
    %c0_1 = arith.constant 0 : index
    %0 = vector.load %arg1[%c0, %c0_0, %c0_1] : memref<1x64x256xf32, #tpu.memory_space<vmem>>, vector<1x64x256xf32>
    %1 = vector.shape_cast %0 : vector<1x64x256xf32> to vector<64x256xf32>
    %c0_2 = arith.constant 0 : index
    %c0_3 = arith.constant 0 : index
    %c0_4 = arith.constant 0 : index
    %2 = vector.load %arg2[%c0_2, %c0_3, %c0_4] : memref<1x64x256xf32, #tpu.memory_space<vmem>>, vector<1x64x256xf32>
    %3 = vector.shape_cast %2 : vector<1x64x256xf32> to vector<64x256xf32>
    %cst = arith.constant dense<0.000000e+00> : vector<64xf32>
    %4 = vector.multi_reduction <add>, %1, %cst [1] : vector<64x256xf32> to vector<64xf32>
    %5 = vector.shape_cast %4 : vector<64xf32> to vector<64x1xf32>
    %cst_5 = arith.constant 3.906250e-03 : f32
    %6 = vector.broadcast %cst_5 : f32 to vector<64x1xf32>
    %7 = arith.mulf %5, %6 : vector<64x1xf32>
    %cst_6 = arith.constant dense<0.000000e+00> : vector<64xf32>
    %8 = vector.multi_reduction <add>, %3, %cst_6 [1] : vector<64x256xf32> to vector<64xf32>
    %9 = vector.shape_cast %8 : vector<64xf32> to vector<64x1xf32>
    %cst_7 = arith.constant 3.906250e-03 : f32
    %10 = vector.broadcast %cst_7 : f32 to vector<64x1xf32>
    %11 = arith.mulf %9, %10 : vector<64x1xf32>
    %cst_8 = arith.constant dense<0xFF800000> : vector<64xf32>
    %12 = vector.multi_reduction <maximumf>, %1, %cst_8 [1] : vector<64x256xf32> to vector<64xf32>
    %13 = vector.shape_cast %12 : vector<64xf32> to vector<64x1xf32>
    %cst_9 = arith.constant dense<0xFF800000> : vector<64xf32>
    %14 = vector.multi_reduction <maximumf>, %3, %cst_9 [1] : vector<64x256xf32> to vector<64xf32>
    %15 = vector.shape_cast %14 : vector<64xf32> to vector<64x1xf32>
    %16 = tpu.concatenate %7, %11, %13, %15 in 0 : vector<64x1xf32>, vector<64x1xf32>, vector<64x1xf32>, vector<64x1xf32> -> vector<256x1xf32>
    %17 = tpu.transpose %16, [1, 0] : vector<256x1xf32> -> vector<1x256xf32>
    %c0_10 = arith.constant 0 : index
    %c0_11 = arith.constant 0 : index
    %18 = vector.load %arg3[%c0_10, %c0_11] : memref<256x256xf32, #tpu.memory_space<vmem>>, vector<256x256xf32>
    %cst_12 = arith.constant dense<0.000000e+00> : vector<1x256xf32>
    %19 = tpu.matmul %17, %18, %cst_12 {dimension_numbers = #tpu.dot_dimension_numbers<[1], [0], [0], [1], [0, 0, 1, 1], [], []>} : vector<1x256xf32>, vector<256x256xf32>, vector<1x256xf32> -> vector<1x256xf32>
    %c0_13 = arith.constant 0 : index
    %c0_14 = arith.constant 0 : index
    %20 = vector.load %arg4[%c0_13, %c0_14] : memref<1x256xf32, #tpu.memory_space<vmem>>, vector<1x256xf32>
    %21 = arith.addf %19, %20 : vector<1x256xf32>
    %cst_15 = arith.constant 0.000000e+00 : f32
    %22 = vector.broadcast %cst_15 : f32 to vector<1x256xf32>
    %23 = arith.maximumf %21, %22 : vector<1x256xf32>
    %c0_16 = arith.constant 0 : index
    %c0_17 = arith.constant 0 : index
    %24 = vector.load %arg5[%c0_16, %c0_17] : memref<256x128xf32, #tpu.memory_space<vmem>>, vector<256x128xf32>
    %cst_18 = arith.constant dense<0.000000e+00> : vector<1x128xf32>
    %25 = tpu.matmul %23, %24, %cst_18 {dimension_numbers = #tpu.dot_dimension_numbers<[1], [0], [0], [1], [0, 0, 1, 1], [], []>} : vector<1x256xf32>, vector<256x128xf32>, vector<1x128xf32> -> vector<1x128xf32>
    %c0_19 = arith.constant 0 : index
    %c0_20 = arith.constant 0 : index
    %26 = vector.load %arg6[%c0_19, %c0_20] : memref<1x128xf32, #tpu.memory_space<vmem>>, vector<1x128xf32>
    %27 = arith.addf %25, %26 : vector<1x128xf32>
    %28 = arith.negf %27 : vector<1x128xf32>
    %29 = math.exp %28 : vector<1x128xf32>
    %cst_21 = arith.constant 1.000000e+00 : f32
    %30 = vector.broadcast %cst_21 : f32 to vector<1x128xf32>
    %31 = arith.addf %30, %29 : vector<1x128xf32>
    %32 = arith.divf %30, %31 : vector<1x128xf32>
    %cst_22 = arith.constant 1.000000e+00 : f32
    %33 = vector.broadcast %cst_22 : f32 to vector<1x128xf32>
    %34 = arith.addf %32, %33 : vector<1x128xf32>
    %35 = vector.extract_strided_slice %34 {offsets = [0, 0], sizes = [1, 64], strides = [1, 1]} : vector<1x128xf32> to vector<1x64xf32>
    %36 = tpu.transpose %35, [1, 0] : vector<1x64xf32> -> vector<64x1xf32>
    %37 = vector.extract_strided_slice %34 {offsets = [0, 64], sizes = [1, 64], strides = [1, 1]} : vector<1x128xf32> to vector<1x64xf32>
    %38 = tpu.transpose %37, [1, 0] : vector<1x64xf32> -> vector<64x1xf32>
    %39 = vector.broadcast %36 : vector<64x1xf32> to vector<64x256xf32>
    %40 = arith.mulf %1, %39 : vector<64x256xf32>
    %c0_23 = arith.constant 0 : index
    %c0_24 = arith.constant 0 : index
    %c0_25 = arith.constant 0 : index
    %41 = vector.load %arg7[%c0_23, %c0_24, %c0_25] : memref<1x64x256xf32, #tpu.memory_space<vmem>>, vector<1x64x256xf32>
    %42 = vector.shape_cast %41 : vector<1x64x256xf32> to vector<64x256xf32>
    %43 = vector.shape_cast %40 : vector<64x256xf32> to vector<1x64x256xf32>
    tpu.vector_store %arg7[%c0_23, %c0_24, %c0_25], %43 {strides = array<i32>} : memref<1x64x256xf32, #tpu.memory_space<vmem>>, vector<1x64x256xf32>,
    %44 = vector.broadcast %38 : vector<64x1xf32> to vector<64x256xf32>
    %45 = arith.mulf %3, %44 : vector<64x256xf32>
    %c0_26 = arith.constant 0 : index
    %c0_27 = arith.constant 0 : index
    %c0_28 = arith.constant 0 : index
    %46 = vector.load %arg8[%c0_26, %c0_27, %c0_28] : memref<1x64x256xf32, #tpu.memory_space<vmem>>, vector<1x64x256xf32>
    %47 = vector.shape_cast %46 : vector<1x64x256xf32> to vector<64x256xf32>
    %48 = vector.shape_cast %45 : vector<64x256xf32> to vector<1x64x256xf32>
    tpu.vector_store %arg8[%c0_26, %c0_27, %c0_28], %48 {strides = array<i32>} : memref<1x64x256xf32, #tpu.memory_space<vmem>>, vector<1x64x256xf32>,
    return
  }
  func.func @transform_0(%arg0: i32) -> (i32, i32, i32) {
    %c0_i32 = arith.constant 0 : i32
    %c0_i32_0 = arith.constant 0 : i32
    %c0_i32_1 = arith.constant 0 : i32
    return %arg0, %c0_i32, %c0_i32_0 : i32, i32, i32
  }
  func.func @transform_1(%arg0: i32) -> (i32, i32, i32) {
    %c0_i32 = arith.constant 0 : i32
    %c0_i32_0 = arith.constant 0 : i32
    %c0_i32_1 = arith.constant 0 : i32
    return %arg0, %c0_i32, %c0_i32_0 : i32, i32, i32
  }
  func.func @transform_2(%arg0: i32) -> (i32, i32) {
    %c0_i32 = arith.constant 0 : i32
    %c0_i32_0 = arith.constant 0 : i32
    %c0_i32_1 = arith.constant 0 : i32
    return %c0_i32, %c0_i32_0 : i32, i32
  }
  func.func @transform_3(%arg0: i32) -> (i32, i32) {
    %c0_i32 = arith.constant 0 : i32
    %c0_i32_0 = arith.constant 0 : i32
    %c0_i32_1 = arith.constant 0 : i32
    return %c0_i32, %c0_i32_0 : i32, i32
  }
  func.func @transform_4(%arg0: i32) -> (i32, i32) {
    %c0_i32 = arith.constant 0 : i32
    %c0_i32_0 = arith.constant 0 : i32
    %c0_i32_1 = arith.constant 0 : i32
    return %c0_i32, %c0_i32_0 : i32, i32
  }
  func.func @transform_5(%arg0: i32) -> (i32, i32) {
    %c0_i32 = arith.constant 0 : i32
    %c0_i32_0 = arith.constant 0 : i32
    %c0_i32_1 = arith.constant 0 : i32
    return %c0_i32, %c0_i32_0 : i32, i32
  }
  func.func @transform_6(%arg0: i32) -> (i32, i32, i32) {
    %c0_i32 = arith.constant 0 : i32
    %c0_i32_0 = arith.constant 0 : i32
    %c0_i32_1 = arith.constant 0 : i32
    return %arg0, %c0_i32, %c0_i32_0 : i32, i32, i32
  }
  func.func @transform_7(%arg0: i32) -> (i32, i32, i32) {
    %c0_i32 = arith.constant 0 : i32
    %c0_i32_0 = arith.constant 0 : i32
    %c0_i32_1 = arith.constant 0 : i32
    return %arg0, %c0_i32, %c0_i32_0 : i32, i32, i32
  }
}

</mosaic_0001>

<llo_original>
// kernel: tpu_custom_call.1
$region0: #{tpu_custom_call.1}
  #allocation0 [shape = 'u32[]', space=smem, size = 0x4, offset = 0x4, fixed_abs, tag = 'smem constant byte address 0x4 - core index']
  #allocation1 [shape = 'u32[144,128]{1,0:T(1,128)}', space=vmem, size = 0x12000, scoped, tag = 'internal scratch']
  %s0 = inlined_call_operand.hbm [shape: f32[2,64,256], index: 0, kind: input, shape index: {}]
  %s1 = inlined_call_operand.hbm [shape: f32[2,64,256], index: 1, kind: input, shape index: {}]
  %s2 = inlined_call_operand.hbm [shape: f32[256,256], index: 2, kind: input, shape index: {}]
  %s3 = inlined_call_operand.vmem [shape: f32[1,256], index: 3, kind: input, shape index: {}]
  %s4 = inlined_call_operand.hbm [shape: f32[256,128], index: 4, kind: input, shape index: {}]
  %s5 = inlined_call_operand.vmem [shape: f32[1,128], index: 5, kind: input, shape index: {}]
  %s6 = inlined_call_operand.hbm [shape: f32[2,64,256], index: 6, kind: output, shape index: {0}]
  %s7 = inlined_call_operand.hbm [shape: f32[2,64,256], index: 7, kind: output, shape index: {1}]
  %8 = xla_tuple %s6, %s7
  %s9 = sld [smem:[#allocation0]]
  $region81: #{tpu_custom_call.1} parent=0
    _
  %s11 = ssub.s32 1, %s9
  %s12 = scalar_select 0, %s11, %s9
  $region1: #{tpu_custom_call.1} parent=0
    #allocation2 [shape = 'u8[131072]{0}', space=vmem, size = 0x20000, scoped, tag = 'input window, operand 0']
    #allocation3 [shape = 's32[2]{0}', space=sflag, size = 0x8, scoped, tag = 'scoped memory for tpu_custom_call.1']
    #allocation4 [shape = 's32[2]{0}', space=sflag, size = 0x8, scoped, tag = 'scoped memory for tpu_custom_call.1']
    #allocation5 [shape = 'u8[131072]{0}', space=vmem, size = 0x20000, scoped, tag = 'input window, operand 1']
    #allocation6 [shape = 's32[2]{0}', space=sflag, size = 0x8, scoped, tag = 'scoped memory for tpu_custom_call.1']
    #allocation7 [shape = 'u8[262144]{0}', space=vmem, size = 0x40000, scoped, tag = 'input window, operand 2, single buffered']
    #allocation8 [shape = 'u8[131072]{0}', space=vmem, size = 0x20000, scoped, tag = 'input window, operand 4, single buffered']
    #allocation9 [shape = 's32[1]{0}', space=sflag, size = 0x4, scoped, tag = 'scoped memory for tpu_custom_call.1']
    #allocation10 [shape = 'u8[131072]{0}', space=vmem, size = 0x20000, scoped, tag = 'output window, operand 0']
    #allocation11 [shape = 'u8[131072]{0}', space=vmem, size = 0x20000, scoped, tag = 'output window, operand 1']
    #allocation12 [shape = 's32[2]{0}', space=sflag, size = 0x8, scoped, tag = 'scoped memory for tpu_custom_call.1']
    %13 = vsyncpa [#allocation3], 0
    %s14 = scalar_lea.sflag [#allocation3], 1
    %15 = vsyncpa %s14, 0
    %16 = vsyncpa [#allocation6], 0
    %s17 = scalar_lea.sflag [#allocation6], 1
    %18 = vsyncpa %s17, 0
    %19 = vsyncpa [#allocation9], 0
    %20 = vsyncpa [#allocation4], 0
    %s21 = scalar_lea.sflag [#allocation4], 1
    %22 = vsyncpa %s21, 0
    %23 = vsyncpa [#allocation12], 0
    %s24 = scalar_lea.sflag [#allocation12], 1
    %25 = vsyncpa %s24, 0
    loop: start=0, step=1, limit=4
    $region2: #{tpu_custom_call.1} parent=1 // loop_pre_header
      _
    $region3: #{tpu_custom_call.1} parent=1 // loop_header
      %s27 = sphi 0, %s31
      %p28 = scmp.ge.s32.totalorder %s27, 4
      %s37 = sphi 0, %s39
      %s40 = sphi 0, %s37
      %s41 = sphi 0, %s40
      %s57 = sphi 0, %s41
      %s63 = sphi 0, %s65
      %s66 = sphi 0, %s63
      %s67 = sphi 0, %s66
      %s83 = sphi 0, %s67
      %s87 = sphi 0, %s87
      %s89 = sphi 0, %s87
      %s90 = sphi 0, %s89
      %s104 = sphi 0, %s90
      %s108 = sphi 0, %s108
      %s110 = sphi 0, %s108
      %s111 = sphi 0, %s110
      %s125 = sphi 0, %s111
      %s129 = sphi 0, %s129
      %s131 = sphi 0, %s129
      %s132 = sphi 0, %s131
      %s146 = sphi 0, %s132
      %s150 = sphi 0, %s150
      %s152 = sphi 0, %s150
      %s153 = sphi 0, %s152
      %s167 = sphi 0, %s153
      %s173 = sphi 0, %s175
      %s176 = sphi 0, %s173
      %s177 = sphi 0, %s176
      %s193 = sphi 0, %s177
      %s199 = sphi 0, %s201
      %s202 = sphi 0, %s199
      %s203 = sphi 0, %s202
      %s219 = sphi 0, %s203
    $region4: #{tpu_custom_call.1} parent=1 // loop_header_branch
      %30 = sbr.rel (%p28) target = $region8
    $region5: #{tpu_custom_call.1} parent=1 // loop_body
      %s32 = ssub.s32 %s27, 1
      %s33 = ssub.s32 %s27, 2
      %s34 = sadd.s32 %s27, 1
      %s35 = ssub.s32 %s27, %s34
      %p36 = scmp.eq.s32.totalorder %s35, 0
      %s38 = sadd.s32 %s37, 1
      %s39 = scalar_select %p36, %s37, %s38
      %p42 = pneg %p36
      %p43 = scmp.eq.s32.totalorder %s27, 1
      %p44 = por %p42, %p43
      %p45 = scmp.ne.s32.totalorder %s37, %s40
      %p46 = scmp.eq.s32.totalorder %s27, 0
      %p47 = por %p45, %p46
      %p48 = scmp.ne.s32.totalorder %s37, %s40
      %p49 = scmp.eq.s32.totalorder %s32, 1
      %p50 = por %p48, %p49
      %p51 = scmp.ne.s32.totalorder %s40, %s41
      %p52 = scmp.eq.s32.totalorder %s32, 0
      %p53 = por %p51, %p52
      %p54 = scmp.ne.s32.totalorder %s40, %s41
      %p55 = scmp.eq.s32.totalorder %s33, 1
      %p56 = por %p54, %p55
      %p58 = scmp.ne.s32.totalorder %s41, %s57
      %p59 = scmp.eq.s32.totalorder %s33, 0
      %p60 = por %p58, %p59
      %s61 = ssub.s32 %s27, %s34
      %p62 = scmp.eq.s32.totalorder %s61, 0
      %s64 = sadd.s32 %s63, 1
      %s65 = scalar_select %p62, %s63, %s64
      %p68 = pneg %p62
      %p69 = scmp.eq.s32.totalorder %s27, 1
      %p70 = por %p68, %p69
      %p71 = scmp.ne.s32.totalorder %s63, %s66
      %p72 = scmp.eq.s32.totalorder %s27, 0
      %p73 = por %p71, %p72
      %p74 = scmp.ne.s32.totalorder %s63, %s66
      %p75 = scmp.eq.s32.totalorder %s32, 1
      %p76 = por %p74, %p75
      %p77 = scmp.ne.s32.totalorder %s66, %s67
      %p78 = scmp.eq.s32.totalorder %s32, 0
      %p79 = por %p77, %p78
      %p80 = scmp.ne.s32.totalorder %s66, %s67
      %p81 = scmp.eq.s32.totalorder %s33, 1
      %p82 = por %p80, %p81
      %p84 = scmp.ne.s32.totalorder %s67, %s83
      %p85 = scmp.eq.s32.totalorder %s33, 0
      %p86 = por %p84, %p85
      %s88 = sadd.s32 %s87, 1
      %p91 = scmp.eq.s32.totalorder %s27, 1
      %p92 = scmp.ne.s32.totalorder %s87, %s89
      %p93 = scmp.eq.s32.totalorder %s27, 0
      %p94 = por %p92, %p93
      %p95 = scmp.ne.s32.totalorder %s87, %s89
      %p96 = scmp.eq.s32.totalorder %s32, 1
      %p97 = por %p95, %p96
      %p98 = scmp.ne.s32.totalorder %s89, %s90
      %p99 = scmp.eq.s32.totalorder %s32, 0
      %p100 = por %p98, %p99
      %p101 = scmp.ne.s32.totalorder %s89, %s90
      %p102 = scmp.eq.s32.totalorder %s33, 1
      %p103 = por %p101, %p102
      %p105 = scmp.ne.s32.totalorder %s90, %s104
      %p106 = scmp.eq.s32.totalorder %s33, 0
      %p107 = por %p105, %p106
      %s109 = sadd.s32 %s108, 1
      %p112 = scmp.eq.s32.totalorder %s27, 1
      %p113 = scmp.ne.s32.totalorder %s108, %s110
      %p114 = scmp.eq.s32.totalorder %s27, 0
      %p115 = por %p113, %p114
      %p116 = scmp.ne.s32.totalorder %s108, %s110
      %p117 = scmp.eq.s32.totalorder %s32, 1
      %p118 = por %p116, %p117
      %p119 = scmp.ne.s32.totalorder %s110, %s111
      %p120 = scmp.eq.s32.totalorder %s32, 0
      %p121 = por %p119, %p120
      %p122 = scmp.ne.s32.totalorder %s110, %s111
      %p123 = scmp.eq.s32.totalorder %s33, 1
      %p124 = por %p122, %p123
      %p126 = scmp.ne.s32.totalorder %s111, %s125
      %p127 = scmp.eq.s32.totalorder %s33, 0
      %p128 = por %p126, %p127
      %s130 = sadd.s32 %s129, 1
      %p133 = scmp.eq.s32.totalorder %s27, 1
      %p134 = scmp.ne.s32.totalorder %s129, %s131
      %p135 = scmp.eq.s32.totalorder %s27, 0
      %p136 = por %p134, %p135
      %p137 = scmp.ne.s32.totalorder %s129, %s131
      %p138 = scmp.eq.s32.totalorder %s32, 1
      %p139 = por %p137, %p138
      %p140 = scmp.ne.s32.totalorder %s131, %s132
      %p141 = scmp.eq.s32.totalorder %s32, 0
      %p142 = por %p140, %p141
      %p143 = scmp.ne.s32.totalorder %s131, %s132
      %p144 = scmp.eq.s32.totalorder %s33, 1
      %p145 = por %p143, %p144
      %p147 = scmp.ne.s32.totalorder %s132, %s146
      %p148 = scmp.eq.s32.totalorder %s33, 0
      %p149 = por %p147, %p148
      %s151 = sadd.s32 %s150, 1
      %p154 = scmp.eq.s32.totalorder %s27, 1
      %p155 = scmp.ne.s32.totalorder %s150, %s152
      %p156 = scmp.eq.s32.totalorder %s27, 0
      %p157 = por %p155, %p156
      %p158 = scmp.ne.s32.totalorder %s150, %s152
      %p159 = scmp.eq.s32.totalorder %s32, 1
      %p160 = por %p158, %p159
      %p161 = scmp.ne.s32.totalorder %s152, %s153
      %p162 = scmp.eq.s32.totalorder %s32, 0
      %p163 = por %p161, %p162
      %p164 = scmp.ne.s32.totalorder %s152, %s153
      %p165 = scmp.eq.s32.totalorder %s33, 1
      %p166 = por %p164, %p165
      %p168 = scmp.ne.s32.totalorder %s153, %s167
      %p169 = scmp.eq.s32.totalorder %s33, 0
      %p170 = por %p168, %p169
      %s171 = ssub.s32 %s27, %s34
      %p172 = scmp.eq.s32.totalorder %s171, 0
      %s174 = sadd.s32 %s173, 1
      %s175 = scalar_select %p172, %s173, %s174
      %p178 = pneg %p172
      %p179 = scmp.eq.s32.totalorder %s27, 1
      %p180 = por %p178, %p179
      %p181 = scmp.ne.s32.totalorder %s173, %s176
      %p182 = scmp.eq.s32.totalorder %s27, 0
      %p183 = por %p181, %p182
      %p184 = scmp.ne.s32.totalorder %s173, %s176
      %p185 = scmp.eq.s32.totalorder %s32, 1
      %p186 = por %p184, %p185
      %p187 = scmp.ne.s32.totalorder %s176, %s177
      %p188 = scmp.eq.s32.totalorder %s32, 0
      %p189 = por %p187, %p188
      %p190 = scmp.ne.s32.totalorder %s176, %s177
      %p191 = scmp.eq.s32.totalorder %s33, 1
      %p192 = por %p190, %p191
      %p194 = scmp.ne.s32.totalorder %s177, %s193
      %p195 = scmp.eq.s32.totalorder %s33, 0
      %p196 = por %p194, %p195
      %s197 = ssub.s32 %s27, %s34
      %p198 = scmp.eq.s32.totalorder %s197, 0
      %s200 = sadd.s32 %s199, 1
      %s201 = scalar_select %p198, %s199, %s200
      %p204 = pneg %p198
      %p205 = scmp.eq.s32.totalorder %s27, 1
      %p206 = por %p204, %p205
      %p207 = scmp.ne.s32.totalorder %s199, %s202
      %p208 = scmp.eq.s32.totalorder %s27, 0
      %p209 = por %p207, %p208
      %p210 = scmp.ne.s32.totalorder %s199, %s202
      %p211 = scmp.eq.s32.totalorder %s32, 1
      %p212 = por %p210, %p211
      %p213 = scmp.ne.s32.totalorder %s202, %s203
      %p214 = scmp.eq.s32.totalorder %s32, 0
      %p215 = por %p213, %p214
      %p216 = scmp.ne.s32.totalorder %s202, %s203
      %p217 = scmp.eq.s32.totalorder %s33, 1
      %p218 = por %p216, %p217
      %p220 = scmp.ne.s32.totalorder %s203, %s219
      %p221 = scmp.eq.s32.totalorder %s33, 0
      %p222 = por %p220, %p221
      %p223 = scmp.le.s32.totalorder 1, %s27
      %p224 = scmp.lt.s32.totalorder %s27, 3
      %p225 = pnand %p223, %p224
      %p226 = pneg %p225
      // Predicated region
      $region9: #{tpu_custom_call.1} parent=5 // pred_check
        _
      $region10: #{tpu_custom_call.1} parent=5 // pred_check_branch
        %228 = sbr.rel (%p225) target = $region12
      $region11: #{tpu_custom_call.1} parent=5 // pred_region
        %s229 = ssub.s32 %s27, 1
        // Predicated region
        $region13: #{tpu_custom_call.1} parent=11 // pred_check
          %p230 = pneg %p100
        $region14: #{tpu_custom_call.1} parent=11 // pred_check_branch
          %232 = sbr.rel (%p230) target = $region16
        $region15: #{tpu_custom_call.1} parent=11 // pred_region
          %s234 = ssub.s32 8192, 8192
          %235 = vsyncadd [#allocation6], %s234
          %s236 = sshll.u32 [#allocation7], 4
          %s237 = int_to_ptr.vmem [resolvable:$true] %s236
          %242 = dma.hbm_to_vmem [thread:$0]  %s2, 8192, %s237, [#allocation6], 256, 256, 16
        $region16: #{tpu_custom_call.1} parent=11 // pred_fallthru
          _
        // Predicated region
        $region17: #{tpu_custom_call.1} parent=11 // pred_check
          %p243 = pneg %p121
        $region18: #{tpu_custom_call.1} parent=11 // pred_check_branch
          %245 = sbr.rel (%p243) target = $region20
        $region19: #{tpu_custom_call.1} parent=11 // pred_region
          _
        $region20: #{tpu_custom_call.1} parent=11 // pred_fallthru
          _
        // Predicated region
        $region21: #{tpu_custom_call.1} parent=11 // pred_check
          %p246 = pneg %p142
        $region22: #{tpu_custom_call.1} parent=11 // pred_check_branch
          %248 = sbr.rel (%p246) target = $region24
        $region23: #{tpu_custom_call.1} parent=11 // pred_region
          %s250 = ssub.s32 4096, 4096
          %251 = vsyncadd [#allocation9], %s250
          %s252 = sshll.u32 [#allocation8], 4
          %s253 = int_to_ptr.vmem [resolvable:$true] %s252
          %258 = dma.hbm_to_vmem [thread:$0]  %s4, 4096, %s253, [#allocation9], 128, 128, 8
        $region24: #{tpu_custom_call.1} parent=11 // pred_fallthru
          _
        // Predicated region
        $region25: #{tpu_custom_call.1} parent=11 // pred_check
          %p259 = pneg %p163
        $region26: #{tpu_custom_call.1} parent=11 // pred_check_branch
          %261 = sbr.rel (%p259) target = $region28
        $region27: #{tpu_custom_call.1} parent=11 // pred_region
          _
        $region28: #{tpu_custom_call.1} parent=11 // pred_fallthru
          _
      $region12: #{tpu_custom_call.1} parent=5 // pred_fallthru
        _
      %p262 = scmp.lt.s32.totalorder %s27, 2
      // Predicated region
      $region29: #{tpu_custom_call.1} parent=5 // pred_check
        %p263 = pneg %p262
      $region30: #{tpu_custom_call.1} parent=5 // pred_check_branch
        %265 = sbr.rel (%p263) target = $region32
      $region31: #{tpu_custom_call.1} parent=5 // pred_region
        // Predicated region
        $region33: #{tpu_custom_call.1} parent=31 // pred_check
          %p266 = pneg %p47
        $region34: #{tpu_custom_call.1} parent=31 // pred_check_branch
          %268 = sbr.rel (%p266) target = $region36
        $region35: #{tpu_custom_call.1} parent=31 // pred_region
          %s269 = sand.u32 %s37, 1
          %s270 = scalar_lea.sflag [#allocation3], %s269
          %s271 = sand.u32 %s37, 1
          %s272 = smul.addr %s271, 128
          %s273 = scalar_lea.vmem [#allocation2], %s272
          %s275 = ssub.s32 2048, 2048
          %276 = vsyncadd %s270, %s275
          %s277 = smul.addr %s27, 16
          %s278 = smul.addr %s277, 128
          %s279 = scalar_lea.hbm %s0, %s278
          %s280 = sshll.u32 %s273, 4
          %s281 = int_to_ptr.vmem [resolvable:$true] %s280
          %286 = dma.hbm_to_vmem [thread:$0]  %s279, 2048, %s281, %s270, 256, 256, 16
        $region36: #{tpu_custom_call.1} parent=31 // pred_fallthru
          _
        // Predicated region
        $region37: #{tpu_custom_call.1} parent=31 // pred_check
          %p287 = pneg %p73
        $region38: #{tpu_custom_call.1} parent=31 // pred_check_branch
          %289 = sbr.rel (%p287) target = $region40
        $region39: #{tpu_custom_call.1} parent=31 // pred_region
          %s290 = sand.u32 %s27, 1
          %s291 = scalar_lea.sflag [#allocation6], %s290
          %s292 = sand.u32 %s63, 1
          %s293 = smul.addr %s292, 128
          %s294 = scalar_lea.vmem [#allocation5], %s293
          %s296 = ssub.s32 2048, 2048
          %297 = vsyncadd %s291, %s296
          %s298 = smul.addr %s27, 16
          %s299 = smul.addr %s298, 128
          %s300 = scalar_lea.hbm %s1, %s299
          %s301 = sshll.u32 %s294, 4
          %s302 = int_to_ptr.vmem [resolvable:$true] %s301
          %307 = dma.hbm_to_vmem [thread:$0]  %s300, 2048, %s302, %s291, 256, 256, 16
        $region40: #{tpu_custom_call.1} parent=31 // pred_fallthru
          _
      $region32: #{tpu_custom_call.1} parent=5 // pred_fallthru
        _
      %p308 = scmp.le.s32.totalorder 1, %s27
      %p309 = scmp.lt.s32.totalorder %s27, 3
      %p310 = pnand %p308, %p309
      %p311 = pneg %p310
      // Predicated region
      $region41: #{tpu_custom_call.1} parent=5 // pred_check
        _
      $region42: #{tpu_custom_call.1} parent=5 // pred_check_branch
        %313 = sbr.rel (%p310) target = $region44
      $region43: #{tpu_custom_call.1} parent=5 // pred_region
        %s314 = ssub.s32 %s27, 1
        %s315 = sand.u32 %s40, 1
        %s316 = scalar_lea.sflag [#allocation3], %s315
        %s317 = sand.u32 %s40, 1
        %s318 = smul.addr %s317, 128
        %s319 = scalar_lea.vmem [#allocation2], %s318
        // Predicated region
        $region45: #{tpu_custom_call.1} parent=43 // pred_check
          %p320 = pneg %p53
        $region46: #{tpu_custom_call.1} parent=43 // pred_check_branch
          %322 = sbr.rel (%p320) target = $region48
        $region47: #{tpu_custom_call.1} parent=43 // pred_region
          %323 = dma.done %s316, 2048
        $region48: #{tpu_custom_call.1} parent=43 // pred_fallthru
          _
        %s324 = sand.u32 %s32, 1
        %s325 = scalar_lea.sflag [#allocation6], %s324
        %s326 = sand.u32 %s66, 1
        %s327 = smul.addr %s326, 128
        %s328 = scalar_lea.vmem [#allocation5], %s327
        // Predicated region
        $region49: #{tpu_custom_call.1} parent=43 // pred_check
          %p329 = pneg %p79
        $region50: #{tpu_custom_call.1} parent=43 // pred_check_branch
          %331 = sbr.rel (%p329) target = $region52
        $region51: #{tpu_custom_call.1} parent=43 // pred_region
          %332 = dma.done %s325, 2048
        $region52: #{tpu_custom_call.1} parent=43 // pred_fallthru
          _
        // Predicated region
        $region53: #{tpu_custom_call.1} parent=43 // pred_check
          %p333 = pneg %p100
        $region54: #{tpu_custom_call.1} parent=43 // pred_check_branch
          %335 = sbr.rel (%p333) target = $region56
        $region55: #{tpu_custom_call.1} parent=43 // pred_region
          %336 = dma.done [#allocation6], 8192
        $region56: #{tpu_custom_call.1} parent=43 // pred_fallthru
          _
        // Predicated region
        $region57: #{tpu_custom_call.1} parent=43 // pred_check
          %p337 = pneg %p142
        $region58: #{tpu_custom_call.1} parent=43 // pred_check_branch
          %339 = sbr.rel (%p337) target = $region60
        $region59: #{tpu_custom_call.1} parent=43 // pred_region
          %340 = dma.done [#allocation9], 4096
        $region60: #{tpu_custom_call.1} parent=43 // pred_fallthru
          _
        %s341 = sand.u32 %s40, 1
        %s342 = scalar_lea.sflag [#allocation3], %s341
        %s343 = sand.u32 %s40, 1
        %s344 = smul.addr %s343, 128
        %s345 = scalar_lea.vmem [#allocation2], %s344
        %p346 = pneg %p53
        %p347 = pneg %p50
        %s348 = sand.u32 %s32, 1
        %s349 = scalar_lea.sflag [#allocation6], %s348
        %s350 = sand.u32 %s66, 1
        %s351 = smul.addr %s350, 128
        %s352 = scalar_lea.vmem [#allocation5], %s351
        %p353 = pneg %p79
        %p354 = pneg %p76
        %p355 = pneg %p100
        %p356 = pneg %p97
        %p357 = pneg %p121
        %p358 = pneg %p118
        %p359 = pneg %p142
        %p360 = pneg %p139
        %p361 = pneg %p163
        %p362 = pneg %p160
        %p363 = pneg %p189
        %p364 = pneg %p186
        %s365 = sand.u32 %s176, 1
        %s366 = scalar_lea.sflag [#allocation4], %s365
        %s367 = sand.u32 %s176, 1
        %s368 = smul.addr %s367, 128
        %s369 = scalar_lea.vmem [#allocation10], %s368
        %p370 = pneg %p215
        %p371 = pneg %p212
        %s372 = sand.u32 %s202, 1
        %s373 = scalar_lea.sflag [#allocation12], %s372
        %s374 = sand.u32 %s202, 1
        %s375 = smul.addr %s374, 128
        %s376 = scalar_lea.vmem [#allocation11], %s375
        %v377 = vld [vmem:[%s319] sm:$0xff]
        %v378 = vld [vmem:[%s319 + $0x8] sm:$0xff]
        %v379 = vld [vmem:[%s319 + $0x10] sm:$0xff]
        %v380 = vld [vmem:[%s319 + $0x18] sm:$0xff]
        %v381 = vld [vmem:[%s319 + $0x20] sm:$0xff]
        %v382 = vld [vmem:[%s319 + $0x28] sm:$0xff]
        %v383 = vld [vmem:[%s319 + $0x30] sm:$0xff]
        %v384 = vld [vmem:[%s319 + $0x38] sm:$0xff]
        %v385 = vld [vmem:[%s319 + $0x40] sm:$0xff]
        %v386 = vld [vmem:[%s319 + $0x48] sm:$0xff]
        %v387 = vld [vmem:[%s319 + $0x50] sm:$0xff]
        %v388 = vld [vmem:[%s319 + $0x58] sm:$0xff]
        %v389 = vld [vmem:[%s319 + $0x60] sm:$0xff]
        %v390 = vld [vmem:[%s319 + $0x68] sm:$0xff]
        %v391 = vld [vmem:[%s319 + $0x70] sm:$0xff]
        %v392 = vld [vmem:[%s319 + $0x78] sm:$0xff]
        %v393 = vld [vmem:[%s328] sm:$0xff]
        %v394 = vld [vmem:[%s328 + $0x8] sm:$0xff]
        %v395 = vld [vmem:[%s328 + $0x10] sm:$0xff]
        %v396 = vld [vmem:[%s328 + $0x18] sm:$0xff]
        %v397 = vld [vmem:[%s328 + $0x20] sm:$0xff]
        %v398 = vld [vmem:[%s328 + $0x28] sm:$0xff]
        %v399 = vld [vmem:[%s328 + $0x30] sm:$0xff]
        %v400 = vld [vmem:[%s328 + $0x38] sm:$0xff]
        %v401 = vld [vmem:[%s328 + $0x40] sm:$0xff]
        %v402 = vld [vmem:[%s328 + $0x48] sm:$0xff]
        %v403 = vld [vmem:[%s328 + $0x50] sm:$0xff]
        %v404 = vld [vmem:[%s328 + $0x58] sm:$0xff]
        %v405 = vld [vmem:[%s328 + $0x60] sm:$0xff]
        %v406 = vld [vmem:[%s328 + $0x68] sm:$0xff]
        %v407 = vld [vmem:[%s328 + $0x70] sm:$0xff]
        %v408 = vld [vmem:[%s328 + $0x78] sm:$0xff]
        %v409 = vadd.f32 %v377, %v378
        %410 = vadd.xlane.f32.xlu0 %v409
        %v411 = vpop.xlane.xlu0 %410
        %v412 = vadd.f32 %v379, %v380
        %413 = vadd.xlane.f32.xlu0 %v412
        %v414 = vpop.xlane.xlu0 %413
        %v415 = vadd.f32 %v381, %v382
        %416 = vadd.xlane.f32.xlu0 %v415
        %v417 = vpop.xlane.xlu0 %416
        %v418 = vadd.f32 %v383, %v384
        %419 = vadd.xlane.f32.xlu0 %v418
        %v420 = vpop.xlane.xlu0 %419
        %v421 = vadd.f32 %v385, %v386
        %422 = vadd.xlane.f32.xlu0 %v421
        %v423 = vpop.xlane.xlu0 %422
        %v424 = vadd.f32 %v387, %v388
        %425 = vadd.xlane.f32.xlu0 %v424
        %v426 = vpop.xlane.xlu0 %425
        %v427 = vadd.f32 %v389, %v390
        %428 = vadd.xlane.f32.xlu0 %v427
        %v429 = vpop.xlane.xlu0 %428
        %v430 = vadd.f32 %v391, %v392
        %431 = vadd.xlane.f32.xlu0 %v430
        %v432 = vpop.xlane.xlu0 %431
        %v433 = vmul.f32 %v411, 0.00390625
        %v434 = vmul.f32 %v414, 0.00390625
        %v435 = vmul.f32 %v417, 0.00390625
        %v436 = vmul.f32 %v420, 0.00390625
        %v437 = vmul.f32 %v423, 0.00390625
        %v438 = vmul.f32 %v426, 0.00390625
        %v439 = vmul.f32 %v429, 0.00390625
        %v440 = vmul.f32 %v432, 0.00390625
        %v441 = vadd.f32 %v393, %v394
        %442 = vadd.xlane.f32.xlu0 %v441
        %v443 = vpop.xlane.xlu0 %442
        %v444 = vadd.f32 %v395, %v396
        %445 = vadd.xlane.f32.xlu0 %v444
        %v446 = vpop.xlane.xlu0 %445
        %v447 = vadd.f32 %v397, %v398
        %448 = vadd.xlane.f32.xlu0 %v447
        %v449 = vpop.xlane.xlu0 %448
        %v450 = vadd.f32 %v399, %v400
        %451 = vadd.xlane.f32.xlu0 %v450
        %v452 = vpop.xlane.xlu0 %451
        %v453 = vadd.f32 %v401, %v402
        %454 = vadd.xlane.f32.xlu0 %v453
        %v455 = vpop.xlane.xlu0 %454
        %v456 = vadd.f32 %v403, %v404
        %457 = vadd.xlane.f32.xlu0 %v456
        %v458 = vpop.xlane.xlu0 %457
        %v459 = vadd.f32 %v405, %v406
        %460 = vadd.xlane.f32.xlu0 %v459
        %v461 = vpop.xlane.xlu0 %460
        %v462 = vadd.f32 %v407, %v408
        %463 = vadd.xlane.f32.xlu0 %v462
        %v464 = vpop.xlane.xlu0 %463
        %v465 = vmul.f32 %v443, 0.00390625
        %v466 = vmul.f32 %v446, 0.00390625
        %v467 = vmul.f32 %v449, 0.00390625
        %v468 = vmul.f32 %v452, 0.00390625
        %v469 = vmul.f32 %v455, 0.00390625
        %v470 = vmul.f32 %v458, 0.00390625
        %v471 = vmul.f32 %v461, 0.00390625
        %v472 = vmul.f32 %v464, 0.00390625
        %v473 = vmax.f32 %v377, %v378
        %474 = vmax.xlane.f32.xlu0 %v473
        %v475 = vpop.xlane.xlu0 %474
        %v476 = vmax.f32 %v379, %v380
        %477 = vmax.xlane.f32.xlu0 %v476
        %v478 = vpop.xlane.xlu0 %477
        %v479 = vmax.f32 %v381, %v382
        %480 = vmax.xlane.f32.xlu0 %v479
        %v481 = vpop.xlane.xlu0 %480
        %v482 = vmax.f32 %v383, %v384
        %483 = vmax.xlane.f32.xlu0 %v482
        %v484 = vpop.xlane.xlu0 %483
        %v485 = vmax.f32 %v385, %v386
        %486 = vmax.xlane.f32.xlu0 %v485
        %v487 = vpop.xlane.xlu0 %486
        %v488 = vmax.f32 %v387, %v388
        %489 = vmax.xlane.f32.xlu0 %v488
        %v490 = vpop.xlane.xlu0 %489
        %v491 = vmax.f32 %v389, %v390
        %492 = vmax.xlane.f32.xlu0 %v491
        %v493 = vpop.xlane.xlu0 %492
        %v494 = vmax.f32 %v391, %v392
        %495 = vmax.xlane.f32.xlu0 %v494
        %v496 = vpop.xlane.xlu0 %495
        %v497 = vmax.f32 %v393, %v394
        %498 = vmax.xlane.f32.xlu0 %v497
        %v499 = vpop.xlane.xlu0 %498
        %v500 = vmax.f32 %v395, %v396
        %501 = vmax.xlane.f32.xlu0 %v500
        %v502 = vpop.xlane.xlu0 %501
        %v503 = vmax.f32 %v397, %v398
        %504 = vmax.xlane.f32.xlu0 %v503
        %v505 = vpop.xlane.xlu0 %504
        %v506 = vmax.f32 %v399, %v400
        %507 = vmax.xlane.f32.xlu0 %v506
        %v508 = vpop.xlane.xlu0 %507
        %v509 = vmax.f32 %v401, %v402
        %510 = vmax.xlane.f32.xlu0 %v509
        %v511 = vpop.xlane.xlu0 %510
        %v512 = vmax.f32 %v403, %v404
        %513 = vmax.xlane.f32.xlu0 %v512
        %v514 = vpop.xlane.xlu0 %513
        %v515 = vmax.f32 %v405, %v406
        %516 = vmax.xlane.f32.xlu0 %v515
        %v517 = vpop.xlane.xlu0 %516
        %v518 = vmax.f32 %v407, %v408
        %519 = vmax.xlane.f32.xlu0 %v518
        %v520 = vpop.xlane.xlu0 %519
        %521 = vxpose.xlu0.b32.start [1/16] %v433, 128
        %522 = vxpose.xlu0.b32.cont [2/16] %v434, 128
        %523 = vxpose.xlu0.b32.cont [3/16] %v435, 128
        %524 = vxpose.xlu0.b32.cont [4/16] %v436, 128
        %525 = vxpose.xlu0.b32.cont [5/16] %v437, 128
        %526 = vxpose.xlu0.b32.cont [6/16] %v438, 128
        %527 = vxpose.xlu0.b32.cont [7/16] %v439, 128
        %528 = vxpose.xlu0.b32.cont [8/16] %v440, 128
        %529 = vxpose.xlu0.b32.cont [9/16] %v465, 128
        %530 = vxpose.xlu0.b32.cont [10/16] %v466, 128
        %531 = vxpose.xlu0.b32.cont [11/16] %v467, 128
        %532 = vxpose.xlu0.b32.cont [12/16] %v468, 128
        %533 = vxpose.xlu0.b32.cont [13/16] %v469, 128
        %534 = vxpose.xlu0.b32.cont [14/16] %v470, 128
        %535 = vxpose.xlu0.b32.cont [15/16] %v471, 128
        %536 = vxpose.xlu0.b32.end [16/16] %v472, 128
        %v537 = vpop.trf.xlu0
        %v538 = vpop.trf.xlu0
        %v539 = vpop.trf.xlu0
        %v540 = vpop.trf.xlu0
        %v541 = vpop.trf.xlu0
        %v542 = vpop.trf.xlu0
        %v543 = vpop.trf.xlu0
        %v544 = vpop.trf.xlu0
        %v545 = vpop.trf.xlu0
        %v546 = vpop.trf.xlu0
        %v547 = vpop.trf.xlu0
        %v548 = vpop.trf.xlu0
        %v549 = vpop.trf.xlu0
        %v550 = vpop.trf.xlu0
        %v551 = vpop.trf.xlu0
        %v552 = vpop.trf.xlu0
        %553 = vxpose.xlu0.b32.start [1/16] %v475, 128
        %554 = vxpose.xlu0.b32.cont [2/16] %v478, 128
        %555 = vxpose.xlu0.b32.cont [3/16] %v481, 128
        %556 = vxpose.xlu0.b32.cont [4/16] %v484, 128
        %557 = vxpose.xlu0.b32.cont [5/16] %v487, 128
        %558 = vxpose.xlu0.b32.cont [6/16] %v490, 128
        %559 = vxpose.xlu0.b32.cont [7/16] %v493, 128
        %560 = vxpose.xlu0.b32.cont [8/16] %v496, 128
        %561 = vxpose.xlu0.b32.cont [9/16] %v499, 128
        %562 = vxpose.xlu0.b32.cont [10/16] %v502, 128
        %563 = vxpose.xlu0.b32.cont [11/16] %v505, 128
        %564 = vxpose.xlu0.b32.cont [12/16] %v508, 128
        %565 = vxpose.xlu0.b32.cont [13/16] %v511, 128
        %566 = vxpose.xlu0.b32.cont [14/16] %v514, 128
        %567 = vxpose.xlu0.b32.cont [15/16] %v517, 128
        %568 = vxpose.xlu0.b32.end [16/16] %v520, 128
        %v569 = vpop.trf.xlu0
        %v570 = vpop.trf.xlu0
        %v571 = vpop.trf.xlu0
        %v572 = vpop.trf.xlu0
        %v573 = vpop.trf.xlu0
        %v574 = vpop.trf.xlu0
        %v575 = vpop.trf.xlu0
        %v576 = vpop.trf.xlu0
        %v577 = vpop.trf.xlu0
        %v578 = vpop.trf.xlu0
        %v579 = vpop.trf.xlu0
        %v580 = vpop.trf.xlu0
        %v581 = vpop.trf.xlu0
        %v582 = vpop.trf.xlu0
        %v583 = vpop.trf.xlu0
        %v584 = vpop.trf.xlu0
        %v585 = vld [vmem:[#allocation7] sm:$0xff]
        %v586 = vld [vmem:[#allocation7 + $0x8] sm:$0xff]
        %v587 = vld [vmem:[#allocation7 + $0x10] sm:$0xff]
        %v588 = vld [vmem:[#allocation7 + $0x18] sm:$0xff]
        %v589 = vld [vmem:[#allocation7 + $0x20] sm:$0xff]
        %v590 = vld [vmem:[#allocation7 + $0x28] sm:$0xff]
        %v591 = vld [vmem:[#allocation7 + $0x30] sm:$0xff]
        %v592 = vld [vmem:[#allocation7 + $0x38] sm:$0xff]
        %v593 = vld [vmem:[#allocation7 + $0x40] sm:$0xff]
        %v594 = vld [vmem:[#allocation7 + $0x48] sm:$0xff]
        %v595 = vld [vmem:[#allocation7 + $0x50] sm:$0xff]
        %v596 = vld [vmem:[#allocation7 + $0x58] sm:$0xff]
        %v597 = vld [vmem:[#allocation7 + $0x60] sm:$0xff]
        %v598 = vld [vmem:[#allocation7 + $0x68] sm:$0xff]
        %v599 = vld [vmem:[#allocation7 + $0x70] sm:$0xff]
        %v600 = vld [vmem:[#allocation7 + $0x78] sm:$0xff]
        %v601 = vld [vmem:[#allocation7 + $0x80] sm:$0xff]
        %v602 = vld [vmem:[#allocation7 + $0x88] sm:$0xff]
        %v603 = vld [vmem:[#allocation7 + $0x90] sm:$0xff]
        %v604 = vld [vmem:[#allocation7 + $0x98] sm:$0xff]
        %v605 = vld [vmem:[#allocation7 + $0xa0] sm:$0xff]
        %v606 = vld [vmem:[#allocation7 + $0xa8] sm:$0xff]
        %v607 = vld [vmem:[#allocation7 + $0xb0] sm:$0xff]
        %v608 = vld [vmem:[#allocation7 + $0xb8] sm:$0xff]
        %v609 = vld [vmem:[#allocation7 + $0xc0] sm:$0xff]
        %v610 = vld [vmem:[#allocation7 + $0xc8] sm:$0xff]
        %v611 = vld [vmem:[#allocation7 + $0xd0] sm:$0xff]
        %v612 = vld [vmem:[#allocation7 + $0xd8] sm:$0xff]
        %v613 = vld [vmem:[#allocation7 + $0xe0] sm:$0xff]
        %v614 = vld [vmem:[#allocation7 + $0xe8] sm:$0xff]
        %v615 = vld [vmem:[#allocation7 + $0xf0] sm:$0xff]
        %v616 = vld [vmem:[#allocation7 + $0xf8] sm:$0xff]
        %v617 = vld [vmem:[#allocation7 + $0x100] sm:$0xff]
        %v618 = vld [vmem:[#allocation7 + $0x108] sm:$0xff]
        %v619 = vld [vmem:[#allocation7 + $0x110] sm:$0xff]
        %v620 = vld [vmem:[#allocation7 + $0x118] sm:$0xff]
        %v621 = vld [vmem:[#allocation7 + $0x120] sm:$0xff]
        %v622 = vld [vmem:[#allocation7 + $0x128] sm:$0xff]
        %v623 = vld [vmem:[#allocation7 + $0x130] sm:$0xff]
        %v624 = vld [vmem:[#allocation7 + $0x138] sm:$0xff]
        %v625 = vld [vmem:[#allocation7 + $0x140] sm:$0xff]
        %v626 = vld [vmem:[#allocation7 + $0x148] sm:$0xff]
        %v627 = vld [vmem:[#allocation7 + $0x150] sm:$0xff]
        %v628 = vld [vmem:[#allocation7 + $0x158] sm:$0xff]
        %v629 = vld [vmem:[#allocation7 + $0x160] sm:$0xff]
        %v630 = vld [vmem:[#allocation7 + $0x168] sm:$0xff]
        %v631 = vld [vmem:[#allocation7 + $0x170] sm:$0xff]
        %v632 = vld [vmem:[#allocation7 + $0x178] sm:$0xff]
        %v633 = vld [vmem:[#allocation7 + $0x180] sm:$0xff]
        %v634 = vld [vmem:[#allocation7 + $0x188] sm:$0xff]
        %v635 = vld [vmem:[#allocation7 + $0x190] sm:$0xff]
        %v636 = vld [vmem:[#allocation7 + $0x198] sm:$0xff]
        %v637 = vld [vmem:[#allocation7 + $0x1a0] sm:$0xff]
        %v638 = vld [vmem:[#allocation7 + $0x1a8] sm:$0xff]
        %v639 = vld [vmem:[#allocation7 + $0x1b0] sm:$0xff]
        %v640 = vld [vmem:[#allocation7 + $0x1b8] sm:$0xff]
        %v641 = vld [vmem:[#allocation7 + $0x1c0] sm:$0xff]
        %v642 = vld [vmem:[#allocation7 + $0x1c8] sm:$0xff]
        %v643 = vld [vmem:[#allocation7 + $0x1d0] sm:$0xff]
        %v644 = vld [vmem:[#allocation7 + $0x1d8] sm:$0xff]
        %v645 = vld [vmem:[#allocation7 + $0x1e0] sm:$0xff]
        %v646 = vld [vmem:[#allocation7 + $0x1e8] sm:$0xff]
        %v647 = vld [vmem:[#allocation7 + $0x1f0] sm:$0xff]
        %v648 = vld [vmem:[#allocation7 + $0x1f8] sm:$0xff]
        %v649 = vld [vmem:[%s3] sm:$0x3]
        %v651 = vlaneseq
        %v652 = vshrl.u32 %v651, 7
        %v653 = vsub.s32 0, %v652
        %v654 = vrot.slane %v649, %v653
        %v655 = vlaneseq
        %v656 = vshrl.u32 %v655, 7
        %v657 = vsub.s32 1, %v656
        %v658 = vrot.slane %v649, %v657
        %661 = vmatprep.subr.mxu0 %v586
        %662 = vmatpush1.msra.mxu0 %v585
        %663 = vmatprep.subr.mxu0 %v588
        %664 = vmatpush1.msra.mxu0 %v587
        %665 = vmatprep.subr.mxu0 %v590
        %666 = vmatpush1.msra.mxu0 %v589
        %667 = vmatprep.subr.mxu0 %v592
        %668 = vmatpush1.msra.mxu0 %v591
        %669 = vmatprep.subr.mxu0 %v594
        %670 = vmatpush1.msra.mxu0 %v593
        %671 = vmatprep.subr.mxu0 %v596
        %672 = vmatpush1.msra.mxu0 %v595
        %673 = vmatprep.subr.mxu0 %v598
        %674 = vmatpush1.msra.mxu0 %v597
        %675 = vmatprep.subr.mxu0 %v600
        %676 = vmatpush1.msra.mxu0 %v599
        %677 = vmatprep.subr.mxu0 %v602
        %678 = vmatpush1.msra.mxu0 %v601
        %679 = vmatprep.subr.mxu0 %v604
        %680 = vmatpush1.msra.mxu0 %v603
        %681 = vmatprep.subr.mxu0 %v606
        %682 = vmatpush1.msra.mxu0 %v605
        %683 = vmatprep.subr.mxu0 %v608
        %684 = vmatpush1.msra.mxu0 %v607
        %685 = vmatprep.subr.mxu0 %v610
        %686 = vmatpush1.msra.mxu0 %v609
        %687 = vmatprep.subr.mxu0 %v612
        %688 = vmatpush1.msra.mxu0 %v611
        %689 = vmatprep.subr.mxu0 %v614
        %690 = vmatpush1.msra.mxu0 %v613
        %691 = vmatprep.subr.mxu0 %v616
        %692 = vmatpush1.msra.mxu0 %v615
        %693 = vmatprep.subr.mxu0 %v618
        %694 = vmatpush1.msra.mxu0 %v617
        %695 = vmatprep.subr.mxu0 %v620
        %696 = vmatpush1.msra.mxu0 %v619
        %697 = vmatprep.subr.mxu0 %v622
        %698 = vmatpush1.msra.mxu0 %v621
        %699 = vmatprep.subr.mxu0 %v624
        %700 = vmatpush1.msra.mxu0 %v623
        %701 = vmatprep.subr.mxu0 %v626
        %702 = vmatpush1.msra.mxu0 %v625
        %703 = vmatprep.subr.mxu0 %v628
        %704 = vmatpush1.msra.mxu0 %v627
        %705 = vmatprep.subr.mxu0 %v630
        %706 = vmatpush1.msra.mxu0 %v629
        %707 = vmatprep.subr.mxu0 %v632
        %708 = vmatpush1.msra.mxu0 %v631
        %709 = vmatprep.subr.mxu0 %v634
        %710 = vmatpush1.msra.mxu0 %v633
        %711 = vmatprep.subr.mxu0 %v636
        %712 = vmatpush1.msra.mxu0 %v635
        %713 = vmatprep.subr.mxu0 %v638
        %714 = vmatpush1.msra.mxu0 %v637
        %715 = vmatprep.subr.mxu0 %v640
        %716 = vmatpush1.msra.mxu0 %v639
        %717 = vmatprep.subr.mxu0 %v642
        %718 = vmatpush1.msra.mxu0 %v641
        %719 = vmatprep.subr.mxu0 %v644
        %720 = vmatpush1.msra.mxu0 %v643
        %721 = vmatprep.subr.mxu0 %v646
        %722 = vmatpush1.msra.mxu0 %v645
        %723 = vmatprep.subr.mxu0 %v648
        %724 = vmatpush1.msra.mxu0 %v647
        %725 = vmatprep.mubr.f32.mxu0 %v569
        %726 = vmatmul.mubr.f32.gmra.mrb[0].mxu0 %v537
        %v727 = vpop.f32.mrb[0].mxu0
        %v728 = vadd.f32 %v654, %v727
        %v729 = vpop.f32.mrb[0].mxu0
        %v730 = vadd.f32 %v658, %v729
        %731 = vdwg.mxu0
        %v732 = vmax.f32 %v728, 0.0
        %v733 = vmax.f32 %v730, 0.0
        %v734 = vld [vmem:[#allocation8] sm:$0xff]
        %v735 = vld [vmem:[#allocation8 + $0x8] sm:$0xff]
        %v736 = vld [vmem:[#allocation8 + $0x10] sm:$0xff]
        %v737 = vld [vmem:[#allocation8 + $0x18] sm:$0xff]
        %v738 = vld [vmem:[#allocation8 + $0x20] sm:$0xff]
        %v739 = vld [vmem:[#allocation8 + $0x28] sm:$0xff]
        %v740 = vld [vmem:[#allocation8 + $0x30] sm:$0xff]
        %v741 = vld [vmem:[#allocation8 + $0x38] sm:$0xff]
        %v742 = vld [vmem:[#allocation8 + $0x40] sm:$0xff]
        %v743 = vld [vmem:[#allocation8 + $0x48] sm:$0xff]
        %v744 = vld [vmem:[#allocation8 + $0x50] sm:$0xff]
        %v745 = vld [vmem:[#allocation8 + $0x58] sm:$0xff]
        %v746 = vld [vmem:[#allocation8 + $0x60] sm:$0xff]
        %v747 = vld [vmem:[#allocation8 + $0x68] sm:$0xff]
        %v748 = vld [vmem:[#allocation8 + $0x70] sm:$0xff]
        %v749 = vld [vmem:[#allocation8 + $0x78] sm:$0xff]
        %v750 = vld [vmem:[#allocation8 + $0x80] sm:$0xff]
        %v751 = vld [vmem:[#allocation8 + $0x88] sm:$0xff]
        %v752 = vld [vmem:[#allocation8 + $0x90] sm:$0xff]
        %v753 = vld [vmem:[#allocation8 + $0x98] sm:$0xff]
        %v754 = vld [vmem:[#allocation8 + $0xa0] sm:$0xff]
        %v755 = vld [vmem:[#allocation8 + $0xa8] sm:$0xff]
        %v756 = vld [vmem:[#allocation8 + $0xb0] sm:$0xff]
        %v757 = vld [vmem:[#allocation8 + $0xb8] sm:$0xff]
        %v758 = vld [vmem:[#allocation8 + $0xc0] sm:$0xff]
        %v759 = vld [vmem:[#allocation8 + $0xc8] sm:$0xff]
        %v760 = vld [vmem:[#allocation8 + $0xd0] sm:$0xff]
        %v761 = vld [vmem:[#allocation8 + $0xd8] sm:$0xff]
        %v762 = vld [vmem:[#allocation8 + $0xe0] sm:$0xff]
        %v763 = vld [vmem:[#allocation8 + $0xe8] sm:$0xff]
        %v764 = vld [vmem:[#allocation8 + $0xf0] sm:$0xff]
        %v765 = vld [vmem:[#allocation8 + $0xf8] sm:$0xff]
        %v766 = vld [vmem:[%s5] sm:$0x1]
        %767 = vmatprep.subr.mxu0 0.0
        %768 = vmatpush1.msra.mxu0 %v734
        %769 = vmatprep.subr.mxu0 0.0
        %770 = vmatpush1.msra.mxu0 %v735
        %771 = vmatprep.subr.mxu0 0.0
        %772 = vmatpush1.msra.mxu0 %v736
        %773 = vmatprep.subr.mxu0 0.0
        %774 = vmatpush1.msra.mxu0 %v737
        %775 = vmatprep.subr.mxu0 0.0
        %776 = vmatpush1.msra.mxu0 %v738
        %777 = vmatprep.subr.mxu0 0.0
        %778 = vmatpush1.msra.mxu0 %v739
        %779 = vmatprep.subr.mxu0 0.0
        %780 = vmatpush1.msra.mxu0 %v740
        %781 = vmatprep.subr.mxu0 0.0
        %782 = vmatpush1.msra.mxu0 %v741
        %783 = vmatprep.subr.mxu0 0.0
        %784 = vmatpush1.msra.mxu0 %v742
        %785 = vmatprep.subr.mxu0 0.0
        %786 = vmatpush1.msra.mxu0 %v743
        %787 = vmatprep.subr.mxu0 0.0
        %788 = vmatpush1.msra.mxu0 %v744
        %789 = vmatprep.subr.mxu0 0.0
        %790 = vmatpush1.msra.mxu0 %v745
        %791 = vmatprep.subr.mxu0 0.0
        %792 = vmatpush1.msra.mxu0 %v746
        %793 = vmatprep.subr.mxu0 0.0
        %794 = vmatpush1.msra.mxu0 %v747
        %795 = vmatprep.subr.mxu0 0.0
        %796 = vmatpush1.msra.mxu0 %v748
        %797 = vmatprep.subr.mxu0 0.0
        %798 = vmatpush1.msra.mxu0 %v749
        %799 = vmatprep.subr.mxu0 0.0
        %800 = vmatpush1.msra.mxu0 %v750
        %801 = vmatprep.subr.mxu0 0.0
        %802 = vmatpush1.msra.mxu0 %v751
        %803 = vmatprep.subr.mxu0 0.0
        %804 = vmatpush1.msra.mxu0 %v752
        %805 = vmatprep.subr.mxu0 0.0
        %806 = vmatpush1.msra.mxu0 %v753
        %807 = vmatprep.subr.mxu0 0.0
        %808 = vmatpush1.msra.mxu0 %v754
        %809 = vmatprep.subr.mxu0 0.0
        %810 = vmatpush1.msra.mxu0 %v755
        %811 = vmatprep.subr.mxu0 0.0
        %812 = vmatpush1.msra.mxu0 %v756
        %813 = vmatprep.subr.mxu0 0.0
        %814 = vmatpush1.msra.mxu0 %v757
        %815 = vmatprep.subr.mxu0 0.0
        %816 = vmatpush1.msra.mxu0 %v758
        %817 = vmatprep.subr.mxu0 0.0
        %818 = vmatpush1.msra.mxu0 %v759
        %819 = vmatprep.subr.mxu0 0.0
        %820 = vmatpush1.msra.mxu0 %v760
        %821 = vmatprep.subr.mxu0 0.0
        %822 = vmatpush1.msra.mxu0 %v761
        %823 = vmatprep.subr.mxu0 0.0
        %824 = vmatpush1.msra.mxu0 %v762
        %825 = vmatprep.subr.mxu0 0.0
        %826 = vmatpush1.msra.mxu0 %v763
        %827 = vmatprep.subr.mxu0 0.0
        %828 = vmatpush1.msra.mxu0 %v764
        %829 = vmatprep.subr.mxu0 0.0
        %830 = vmatpush1.msra.mxu0 %v765
        %831 = vmatprep.mubr.f32.mxu0 %v733
        %832 = vmatmul.mubr.f32.gmra.mrb[0].mxu0 %v732
        %v833 = vpop.f32.mrb[0].mxu0
        %v834 = vadd.f32 %v766, %v833
        %v835 = vpop.f32.mrb[0].mxu0
        %836 = vdwg.mxu0
        %v837 = vxor.u32 %v834, 2147483648
        %v838 = vmul.f32 %v837, 1.442695
        %v839 = vpow.pop %v838
        %v840 = vadd.f32 %v839, 1.0
        %v841 = vrcp.pop %v840
        %v842 = vmul.f32 1.0, %v841
        %v843 = vadd.f32 %v842, 1.0
        %844 = vxpose.xlu0.b32.start [1/16] %v843, 128
        %845 = vxpose.xlu0.b32.cont [2/16] 0.0, 128
        %846 = vxpose.xlu0.b32.cont [3/16] 0.0, 128
        %847 = vxpose.xlu0.b32.cont [4/16] 0.0, 128
        %848 = vxpose.xlu0.b32.cont [5/16] 0.0, 128
        %849 = vxpose.xlu0.b32.cont [6/16] 0.0, 128
        %850 = vxpose.xlu0.b32.cont [7/16] 0.0, 128
        %851 = vxpose.xlu0.b32.cont [8/16] 0.0, 128
        %852 = vxpose.xlu0.b32.cont [9/16] 0.0, 128
        %853 = vxpose.xlu0.b32.cont [10/16] 0.0, 128
        %854 = vxpose.xlu0.b32.cont [11/16] 0.0, 128
        %855 = vxpose.xlu0.b32.cont [12/16] 0.0, 128
        %856 = vxpose.xlu0.b32.cont [13/16] 0.0, 128
        %857 = vxpose.xlu0.b32.cont [14/16] 0.0, 128
        %858 = vxpose.xlu0.b32.cont [15/16] 0.0, 128
        %859 = vxpose.xlu0.b32.end [16/16] 0.0, 128
        %v860 = vpop.trf.xlu0
        %v861 = vpop.trf.xlu0
        %v862 = vpop.trf.xlu0
        %v863 = vpop.trf.xlu0
        %v864 = vpop.trf.xlu0
        %v865 = vpop.trf.xlu0
        %v866 = vpop.trf.xlu0
        %v867 = vpop.trf.xlu0
        %v868 = vpop.trf.xlu0
        %v869 = vpop.trf.xlu0
        %v870 = vpop.trf.xlu0
        %v871 = vpop.trf.xlu0
        %v872 = vpop.trf.xlu0
        %v873 = vpop.trf.xlu0
        %v874 = vpop.trf.xlu0
        %v875 = vpop.trf.xlu0
        %877 = vrot.lane.b32.xlu0 %v843, 64
        %v878 = vpop.permute.xlu0 %877
        %880 = vxpose.xlu0.b32.start [1/16] %v878, 128
        %881 = vxpose.xlu0.b32.cont [2/16] 0.0, 128
        %882 = vxpose.xlu0.b32.cont [3/16] 0.0, 128
        %883 = vxpose.xlu0.b32.cont [4/16] 0.0, 128
        %884 = vxpose.xlu0.b32.cont [5/16] 0.0, 128
        %885 = vxpose.xlu0.b32.cont [6/16] 0.0, 128
        %886 = vxpose.xlu0.b32.cont [7/16] 0.0, 128
        %887 = vxpose.xlu0.b32.cont [8/16] 0.0, 128
        %888 = vxpose.xlu0.b32.cont [9/16] 0.0, 128
        %889 = vxpose.xlu0.b32.cont [10/16] 0.0, 128
        %890 = vxpose.xlu0.b32.cont [11/16] 0.0, 128
        %891 = vxpose.xlu0.b32.cont [12/16] 0.0, 128
        %892 = vxpose.xlu0.b32.cont [13/16] 0.0, 128
        %893 = vxpose.xlu0.b32.cont [14/16] 0.0, 128
        %894 = vxpose.xlu0.b32.cont [15/16] 0.0, 128
        %895 = vxpose.xlu0.b32.end [16/16] 0.0, 128
        %v896 = vpop.trf.xlu0
        %v897 = vpop.trf.xlu0
        %v898 = vpop.trf.xlu0
        %v899 = vpop.trf.xlu0
        %v900 = vpop.trf.xlu0
        %v901 = vpop.trf.xlu0
        %v902 = vpop.trf.xlu0
        %v903 = vpop.trf.xlu0
        %v904 = vpop.trf.xlu0
        %v905 = vpop.trf.xlu0
        %v906 = vpop.trf.xlu0
        %v907 = vpop.trf.xlu0
        %v908 = vpop.trf.xlu0
        %v909 = vpop.trf.xlu0
        %v910 = vpop.trf.xlu0
        %v911 = vpop.trf.xlu0
        %913 = vset.pattern.permute.xlu0 0
        %914 = vperm.xlu0 %913, %v860
        %v915 = vpop.permute.xlu0 %914
        %918 = vset.pattern.permute.xlu0 0
        %919 = vperm.xlu0 %918, %v861
        %v920 = vpop.permute.xlu0 %919
        %923 = vset.pattern.permute.xlu0 0
        %924 = vperm.xlu0 %923, %v862
        %v925 = vpop.permute.xlu0 %924
        %928 = vset.pattern.permute.xlu0 0
        %929 = vperm.xlu0 %928, %v863
        %v930 = vpop.permute.xlu0 %929
        %933 = vset.pattern.permute.xlu0 0
        %934 = vperm.xlu0 %933, %v864
        %v935 = vpop.permute.xlu0 %934
        %938 = vset.pattern.permute.xlu0 0
        %939 = vperm.xlu0 %938, %v865
        %v940 = vpop.permute.xlu0 %939
        %943 = vset.pattern.permute.xlu0 0
        %944 = vperm.xlu0 %943, %v866
        %v945 = vpop.permute.xlu0 %944
        %948 = vset.pattern.permute.xlu0 0
        %949 = vperm.xlu0 %948, %v867
        %v950 = vpop.permute.xlu0 %949
        %v952 = vmul.f32 %v377, %v915
        %v953 = vmul.f32 %v378, %v915
        %v954 = vmul.f32 %v379, %v920
        %v955 = vmul.f32 %v380, %v920
        %v956 = vmul.f32 %v381, %v925
        %v957 = vmul.f32 %v382, %v925
        %v958 = vmul.f32 %v383, %v930
        %v959 = vmul.f32 %v384, %v930
        %v960 = vmul.f32 %v385, %v935
        %v961 = vmul.f32 %v386, %v935
        %v962 = vmul.f32 %v387, %v940
        %v963 = vmul.f32 %v388, %v940
        %v964 = vmul.f32 %v389, %v945
        %v965 = vmul.f32 %v390, %v945
        %v966 = vmul.f32 %v391, %v950
        %v967 = vmul.f32 %v392, %v950
        %968 = vst [vmem:[%s369] sm:$0xff] %v952
        %969 = vst [vmem:[%s369 + $0x8] sm:$0xff] %v953
        %970 = vst [vmem:[%s369 + $0x10] sm:$0xff] %v954
        %971 = vst [vmem:[%s369 + $0x18] sm:$0xff] %v955
        %972 = vst [vmem:[%s369 + $0x20] sm:$0xff] %v956
        %973 = vst [vmem:[%s369 + $0x28] sm:$0xff] %v957
        %974 = vst [vmem:[%s369 + $0x30] sm:$0xff] %v958
        %975 = vst [vmem:[%s369 + $0x38] sm:$0xff] %v959
        %976 = vst [vmem:[%s369 + $0x40] sm:$0xff] %v960
        %977 = vst [vmem:[%s369 + $0x48] sm:$0xff] %v961
        %978 = vst [vmem:[%s369 + $0x50] sm:$0xff] %v962
        %979 = vst [vmem:[%s369 + $0x58] sm:$0xff] %v963
        %980 = vst [vmem:[%s369 + $0x60] sm:$0xff] %v964
        %981 = vst [vmem:[%s369 + $0x68] sm:$0xff] %v965
        %982 = vst [vmem:[%s369 + $0x70] sm:$0xff] %v966
        %983 = vst [vmem:[%s369 + $0x78] sm:$0xff] %v967
        %985 = vset.pattern.permute.xlu0 0
        %986 = vperm.xlu0 %985, %v896
        %v987 = vpop.permute.xlu0 %986
        %990 = vset.pattern.permute.xlu0 0
        %991 = vperm.xlu0 %990, %v897
        %v992 = vpop.permute.xlu0 %991
        %995 = vset.pattern.permute.xlu0 0
        %996 = vperm.xlu0 %995, %v898
        %v997 = vpop.permute.xlu0 %996
        %1000 = vset.pattern.permute.xlu0 0
        %1001 = vperm.xlu0 %1000, %v899
        %v1002 = vpop.permute.xlu0 %1001
        %1005 = vset.pattern.permute.xlu0 0
        %1006 = vperm.xlu0 %1005, %v900
        %v1007 = vpop.permute.xlu0 %1006
        %1010 = vset.pattern.permute.xlu0 0
        %1011 = vperm.xlu0 %1010, %v901
        %v1012 = vpop.permute.xlu0 %1011
        %1015 = vset.pattern.permute.xlu0 0
        %1016 = vperm.xlu0 %1015, %v902
        %v1017 = vpop.permute.xlu0 %1016
        %1020 = vset.pattern.permute.xlu0 0
        %1021 = vperm.xlu0 %1020, %v903
        %v1022 = vpop.permute.xlu0 %1021
        %v1024 = vmul.f32 %v393, %v987
        %v1025 = vmul.f32 %v394, %v987
        %v1026 = vmul.f32 %v395, %v992
        %v1027 = vmul.f32 %v396, %v992
        %v1028 = vmul.f32 %v397, %v997
        %v1029 = vmul.f32 %v398, %v997
        %v1030 = vmul.f32 %v399, %v1002
        %v1031 = vmul.f32 %v400, %v1002
        %v1032 = vmul.f32 %v401, %v1007
        %v1033 = vmul.f32 %v402, %v1007
        %v1034 = vmul.f32 %v403, %v1012
        %v1035 = vmul.f32 %v404, %v1012
        %v1036 = vmul.f32 %v405, %v1017
        %v1037 = vmul.f32 %v406, %v1017
        %v1038 = vmul.f32 %v407, %v1022
        %v1039 = vmul.f32 %v408, %v1022
        %1040 = vst [vmem:[%s376] sm:$0xff] %v1024
        %1041 = vst [vmem:[%s376 + $0x8] sm:$0xff] %v1025
        %1042 = vst [vmem:[%s376 + $0x10] sm:$0xff] %v1026
        %1043 = vst [vmem:[%s376 + $0x18] sm:$0xff] %v1027
        %1044 = vst [vmem:[%s376 + $0x20] sm:$0xff] %v1028
        %1045 = vst [vmem:[%s376 + $0x28] sm:$0xff] %v1029
        %1046 = vst [vmem:[%s376 + $0x30] sm:$0xff] %v1030
        %1047 = vst [vmem:[%s376 + $0x38] sm:$0xff] %v1031
        %1048 = vst [vmem:[%s376 + $0x40] sm:$0xff] %v1032
        %1049 = vst [vmem:[%s376 + $0x48] sm:$0xff] %v1033
        %1050 = vst [vmem:[%s376 + $0x50] sm:$0xff] %v1034
        %1051 = vst [vmem:[%s376 + $0x58] sm:$0xff] %v1035
        %1052 = vst [vmem:[%s376 + $0x60] sm:$0xff] %v1036
        %1053 = vst [vmem:[%s376 + $0x68] sm:$0xff] %v1037
        %1054 = vst [vmem:[%s376 + $0x70] sm:$0xff] %v1038
        %1055 = vst [vmem:[%s376 + $0x78] sm:$0xff] %v1039
        %s1056 = sand.u32 %s176, 1
        %s1057 = scalar_lea.sflag [#allocation4], %s1056
        %s1058 = sand.u32 %s176, 1
        %s1059 = smul.addr %s1058, 128
        %s1060 = scalar_lea.vmem [#allocation10], %s1059
        %s1061 = sand.u32 %s202, 1
        %s1062 = scalar_lea.sflag [#allocation12], %s1061
        %s1063 = sand.u32 %s202, 1
        %s1064 = smul.addr %s1063, 128
        %s1065 = scalar_lea.vmem [#allocation11], %s1064
        // Predicated region
        $region61: #{tpu_custom_call.1} parent=43 // pred_check
          %p1066 = pneg %p186
        $region62: #{tpu_custom_call.1} parent=43 // pred_check_branch
          %1068 = sbr.rel (%p1066) target = $region64
        $region63: #{tpu_custom_call.1} parent=43 // pred_region
          %s1070 = ssub.s32 2048, 2048
          %1071 = vsyncadd %s1057, %s1070
          %s1072 = smul.addr %s32, 16
          %s1073 = smul.addr %s1072, 128
          %s1074 = scalar_lea.hbm %s6, %s1073
          %s1075 = sshll.u32 %s1060, 4
          %s1076 = int_to_ptr.vmem [resolvable:$true] %s1075
          %1081 = dma.vmem_to_hbm [thread:$0]  %s1076, 2048, %s1074, %s1057, 256, 256, 16
        $region64: #{tpu_custom_call.1} parent=43 // pred_fallthru
          _
        // Predicated region
        $region65: #{tpu_custom_call.1} parent=43 // pred_check
          %p1082 = pneg %p212
        $region66: #{tpu_custom_call.1} parent=43 // pred_check_branch
          %1084 = sbr.rel (%p1082) target = $region68
        $region67: #{tpu_custom_call.1} parent=43 // pred_region
          %s1086 = ssub.s32 2048, 2048
          %1087 = vsyncadd %s1062, %s1086
          %s1088 = smul.addr %s32, 16
          %s1089 = smul.addr %s1088, 128
          %s1090 = scalar_lea.hbm %s7, %s1089
          %s1091 = sshll.u32 %s1065, 4
          %s1092 = int_to_ptr.vmem [resolvable:$true] %s1091
          %1097 = dma.vmem_to_hbm [thread:$0]  %s1092, 2048, %s1090, %s1062, 256, 256, 16
        $region68: #{tpu_custom_call.1} parent=43 // pred_fallthru
          _
      $region44: #{tpu_custom_call.1} parent=5 // pred_fallthru
        _
      %p1098 = scmp.le.s32.totalorder 2, %s27
      // Predicated region
      $region69: #{tpu_custom_call.1} parent=5 // pred_check
        %p1099 = pneg %p1098
      $region70: #{tpu_custom_call.1} parent=5 // pred_check_branch
        %1101 = sbr.rel (%p1099) target = $region72
      $region71: #{tpu_custom_call.1} parent=5 // pred_region
        %s1102 = ssub.s32 %s27, 2
        // Predicated region
        $region73: #{tpu_custom_call.1} parent=71 // pred_check
          %p1103 = pneg %p192
        $region74: #{tpu_custom_call.1} parent=71 // pred_check_branch
          %1105 = sbr.rel (%p1103) target = $region76
        $region75: #{tpu_custom_call.1} parent=71 // pred_region
          %s1106 = sand.u32 %s177, 1
          %s1107 = scalar_lea.sflag [#allocation4], %s1106
          %s1108 = sand.u32 %s177, 1
          %s1109 = smul.addr %s1108, 128
          %s1110 = scalar_lea.vmem [#allocation10], %s1109
          %1111 = dma.done %s1107, 2048
        $region76: #{tpu_custom_call.1} parent=71 // pred_fallthru
          _
        // Predicated region
        $region77: #{tpu_custom_call.1} parent=71 // pred_check
          %p1112 = pneg %p218
        $region78: #{tpu_custom_call.1} parent=71 // pred_check_branch
          %1114 = sbr.rel (%p1112) target = $region80
        $region79: #{tpu_custom_call.1} parent=71 // pred_region
          %s1115 = sand.u32 %s203, 1
          %s1116 = scalar_lea.sflag [#allocation12], %s1115
          %s1117 = sand.u32 %s203, 1
          %s1118 = smul.addr %s1117, 128
          %s1119 = scalar_lea.vmem [#allocation11], %s1118
          %1120 = dma.done %s1116, 2048
        $region80: #{tpu_custom_call.1} parent=71 // pred_fallthru
          _
      $region72: #{tpu_custom_call.1} parent=5 // pred_fallthru
        _
    $region6: #{tpu_custom_call.1} parent=1 // loop_footer
      %s31 = sadd.s32 1, %s27
    $region7: #{tpu_custom_call.1} parent=1 // loop_footer_branch
      %26 = sbr.rel target = $region3
    $region8: #{tpu_custom_call.1} parent=1 // loop_exit
      _
    %1121 = vsyncpa [#allocation3], 1
    %s1122 = scalar_lea.sflag [#allocation3], 1
    %1123 = vsyncpa %s1122, 1
    %1124 = vsyncpa [#allocation6], 1
    %s1125 = scalar_lea.sflag [#allocation6], 1
    %1126 = vsyncpa %s1125, 1
    %1127 = vsyncpa [#allocation9], 1
    %1128 = vsyncpa [#allocation4], 1
    %s1129 = scalar_lea.sflag [#allocation4], 1
    %1130 = vsyncpa %s1129, 1
    %1131 = vsyncpa [#allocation12], 1
    %s1132 = scalar_lea.sflag [#allocation12], 1
    %1133 = vsyncpa %s1132, 1

</llo_original>
